<compile_context>
chip_gen: v5e
topology: v5e:2x2
jax: 0.10.0
libtpu: 0.0.40
codegen_flags: <defaults>
</compile_context>

<pallas_src>
import functools

import jax
import jax.numpy as jnp
from jax.experimental import pallas as pl
from jax.experimental.pallas import tpu as pltpu

# ---- problem sizes (small, consistent with the module) ----
S, B, E, H, MLP_DIM = 8, 2, 32, 4, 64
HD = E // H
EPS = 1e-5  # torch.nn.LayerNorm default

# ---- packed-parameter layout (every component starts on a 128-lane boundary) ----
WQKV_OFF, WO_OFF, W1_OFF = 0, 128, 256
WCAT_COLS = 384                       # [wqkv(96) pad | wo(32) pad | w1(64) pad]
VROWS, VCOLS = 4, 128                 # bias slab rows: [bqkv | bo | b1 | b2]


def encoder_block_kernel(x_ref, wcat_ref, w2_ref, vec_ref, o_ref):
    """One fused encoder block on the whole (S*B, E) token slab (single grid step)."""
    rows = S * B
    x = x_ref[...]                                        # (rows, E)

    wcat = wcat_ref[...]                                  # (E, 384), 128-aligned components
    wqkv = wcat[:, WQKV_OFF:WQKV_OFF + 3 * E]             # LN1 gain + q-scale pre-folded
    wo = wcat[:, WO_OFF:WO_OFF + E]
    w1 = wcat[:, W1_OFF:W1_OFF + MLP_DIM]                 # LN2 gain pre-folded
    w2 = w2_ref[...]                                      # (MLP, E)

    vec = vec_ref[...]                                    # (4, 128) bias slab, row per vector
    bqkv = vec[0:1, 0:3 * E]                              # LN1 bias pre-folded (+ q-scale)
    bo = vec[1:2, 0:E]
    b1 = vec[2:3, 0:MLP_DIM]                              # LN2 bias pre-folded
    b2 = vec[3:4, 0:E]

    # --- LayerNorm 1 (affine folded into wqkv / bqkv) ---
    mu = jnp.mean(x, axis=-1, keepdims=True)
    var = jnp.mean((x - mu) ** 2, axis=-1, keepdims=True)
    xn = (x - mu) * jax.lax.rsqrt(var + EPS)

    # --- fused QKV projection: one MXU push instead of three ---
    qkv = jnp.dot(xn, wqkv, preferred_element_type=jnp.float32) + bqkv    # (rows, 3E)

    # rows interleave the batch (row = s*B + b); build an additive mask once so the whole
    # batch can attend in a single grid step without cross-batch mixing.  B is a power of 2.
    rq = jax.lax.broadcasted_iota(jnp.int32, (rows, rows), 0) & (B - 1)
    rk = jax.lax.broadcasted_iota(jnp.int32, (rows, rows), 1) & (B - 1)
    addmask = jnp.where(rq == rk, 0.0, -1e30)             # (rows, rows) float32

    # --- attention: static head unroll, NT-form dot_general, no explicit transposes ---
    nt_dims = (((1,), (1,)), ((), ()))                    # contract last dims: A @ B.T
    acc = jnp.zeros((rows, E), jnp.float32)
    for h in range(H):
        qs = qkv[:, h * HD:(h + 1) * HD]                  # 1/sqrt(HD) already folded in
        ks = qkv[:, E + h * HD:E + (h + 1) * HD]
        vs = qkv[:, 2 * E + h * HD:2 * E + (h + 1) * HD]
        sc = jax.lax.dot_general(qs, ks, nt_dims,
                                 preferred_element_type=jnp.float32) + addmask
        sc = sc - jnp.max(sc, axis=-1, keepdims=True)
        p = jnp.exp(sc)
        p = p * pl.reciprocal(jnp.sum(p, axis=-1, keepdims=True), approx=False)
        ctx = jnp.dot(p, vs, preferred_element_type=jnp.float32)          # (rows, HD)
        acc = acc + jnp.dot(ctx, wo[h * HD:(h + 1) * HD, :],
                            preferred_element_type=jnp.float32)
    attn = acc + bo

    x1 = attn + x                                          # residual 1

    # --- LayerNorm 2 (affine folded into w1 / b1) ---
    mu2 = jnp.mean(x1, axis=-1, keepdims=True)
    var2 = jnp.mean((x1 - mu2) ** 2, axis=-1, keepdims=True)
    xn2 = (x1 - mu2) * jax.lax.rsqrt(var2 + EPS)

    # --- MLP: fc1 -> ReLU -> fc2 (dropout_rate = 0 -> identity) ---
    hid = jnp.maximum(jnp.dot(xn2, w1, preferred_element_type=jnp.float32) + b1, 0.0)
    y = jnp.dot(hid, w2, preferred_element_type=jnp.float32) + b2

    o_ref[...] = y + x1                                    # residual 2


def encoder_block(x_sbe, wcat, w2, vec):
    """x_sbe: (S, B, E) float32 (PyTorch seq-first layout).  Returns (S, B, E)."""
    R = S * B
    xf = x_sbe.reshape(R, E)                               # free contiguous collapse
    out = pl.pallas_call(
        encoder_block_kernel,
        out_shape=jax.ShapeDtypeStruct((R, E), jnp.float32),
        grid_spec=pltpu.PrefetchScalarGridSpec(
            num_scalar_prefetch=0,
            grid=(1,),
            in_specs=[
                pl.BlockSpec((R, E), lambda i: (0, 0)),
                pl.BlockSpec((E, WCAT_COLS), lambda i: (0, 0)),
                pl.BlockSpec((MLP_DIM, E), lambda i: (0, 0)),
                pl.BlockSpec((VROWS, VCOLS), lambda i: (0, 0)),
            ],
            out_specs=pl.BlockSpec((R, E), lambda i: (0, 0)),
        ),
        compiler_params=pltpu.CompilerParams(dimension_semantics=("arbitrary",)),
    )(xf, wcat, w2, vec)
    return out.reshape(S, B, E)


# ---------------- parameter construction / packing ----------------
def make_params(key):
    ks = jax.random.split(key, 16)
    wscale = (2.0 / (E + E)) ** 0.5
    return {
        # non-trivial LayerNorm affines / biases so the offline folding is genuinely tested
        "g1": 1.0 + 0.1 * jax.random.normal(ks[6], (1, E), jnp.float32),
        "be1": 0.1 * jax.random.normal(ks[7], (1, E), jnp.float32),
        "wq": jax.random.normal(ks[0], (E, E), jnp.float32) * wscale,
        "bq": 0.1 * jax.random.normal(ks[8], (1, E), jnp.float32),
        "wk": jax.random.normal(ks[1], (E, E), jnp.float32) * wscale,
        "bk": 0.1 * jax.random.normal(ks[9], (1, E), jnp.float32),
        "wv": jax.random.normal(ks[2], (E, E), jnp.float32) * wscale,
        "bv": 0.1 * jax.random.normal(ks[10], (1, E), jnp.float32),
        "wo": jax.random.normal(ks[3], (E, E), jnp.float32) * wscale,
        "bo": 0.1 * jax.random.normal(ks[11], (1, E), jnp.float32),
        "g2": 1.0 + 0.1 * jax.random.normal(ks[12], (1, E), jnp.float32),
        "be2": 0.1 * jax.random.normal(ks[13], (1, E), jnp.float32),
        "w1": jax.random.normal(ks[4], (E, MLP_DIM), jnp.float32) * (2.0 / E) ** 0.5,
        "b1": 0.1 * jax.random.normal(ks[14], (1, MLP_DIM), jnp.float32),
        "w2": jax.random.normal(ks[5], (MLP_DIM, E), jnp.float32) * (2.0 / MLP_DIM) ** 0.5,
        "b2": 0.1 * jax.random.normal(ks[15], (1, E), jnp.float32),
    }


def pack_params(params):
    """One-time preprocessing (outside jit): fold LN affines + query scale into weights,
    pack into three lane-aligned slabs (4 kernel inputs total)."""
    scale = 1.0 / (HD ** 0.5)
    g1 = params["g1"].reshape(E, 1)    # row-wise scaling of E-row weights
    g2 = params["g2"].reshape(E, 1)
    be1, be2 = params["be1"], params["be2"]

    # fold LN1 affine; fold the 1/sqrt(HD) scale into the q part only
    wq = g1 * params["wq"] * scale
    wk = g1 * params["wk"]
    wv = g1 * params["wv"]
    bq = (be1 @ params["wq"] + params["bq"]) * scale
    bk = be1 @ params["wk"] + params["bk"]
    bv = be1 @ params["wv"] + params["bv"]
    wqkv = jnp.concatenate([wq, wk, wv], axis=1)                       # (E, 3E)
    bqkv = jnp.concatenate([bq, bk, bv], axis=1)                       # (1, 3E)

    # fold LN2 affine into fc1
    w1 = g2 * params["w1"]
    b1 = be2 @ params["w1"] + params["b1"]

    # weight slab, every component on a 128-lane boundary
    wcat = jnp.zeros((E, WCAT_COLS), jnp.float32)
    wcat = wcat.at[:, WQKV_OFF:WQKV_OFF + 3 * E].set(wqkv)
    wcat = wcat.at[:, WO_OFF:WO_OFF + E].set(params["wo"])
    wcat = wcat.at[:, W1_OFF:W1_OFF + MLP_DIM].set(w1)

    # bias slab: one vector per row -> sublane-indexed extraction in-kernel
    vec = jnp.zeros((VROWS, VCOLS), jnp.float32)
    vec = vec.at[0, 0:3 * E].set(bqkv[0])
    vec = vec.at[1, 0:E].set(params["bo"][0])
    vec = vec.at[2, 0:MLP_DIM].set(b1[0])
    vec = vec.at[3, 0:E].set(params["b2"][0])

    return wcat, params["w2"], vec


# ---------------- pure-JAX reference (mirrors the PyTorch forward) ----------------
def encoder_block_ref(x_sbe, params):
    def ln(x, g, b):
        mu = jnp.mean(x, axis=-1, keepdims=True)
        var = jnp.mean((x - mu) ** 2, axis=-1, keepdims=True)
        return (x - mu) * jax.lax.rsqrt(var + EPS) * g + b

    x = jnp.transpose(x_sbe, (1, 0, 2))                       # (B, S, E)
    xn = ln(x, params["g1"], params["be1"])
    q = xn @ params["wq"] + params["bq"]
    k = xn @ params["wk"] + params["bk"]
    v = xn @ params["wv"] + params["bv"]
    qh = q.reshape(B, S, H, HD).transpose(0, 2, 1, 3) / (HD ** 0.5)
    kh = k.reshape(B, S, H, HD).transpose(0, 2, 1, 3)
    vh = v.reshape(B, S, H, HD).transpose(0, 2, 1, 3)
    sc = jnp.einsum("bhqd,bhkd->bhqk", qh, kh)
    p = jax.nn.softmax(sc, axis=-1)
    a = jnp.einsum("bhqk,bhkd->bhqd", p, vh).transpose(0, 2, 1, 3).reshape(B, S, E)
    a = a @ params["wo"] + params["bo"]
    x1 = a + x
    xn2 = ln(x1, params["g2"], params["be2"])
    hid = jnp.maximum(xn2 @ params["w1"] + params["b1"], 0.0)
    y = hid @ params["w2"] + params["b2"]
    return jnp.transpose(y + x1, (1, 0, 2))


if __name__ == "__main__":
    key = jax.random.PRNGKey(0)
    kx, kp = jax.random.split(key)
    x = jax.random.normal(kx, (S, B, E), jnp.float32)          # (seq, batch, dim)
    params = make_params(kp)
    wcat, w2, vec = pack_params(params)

    ref = encoder_block_ref(x, params)

    fn = jax.jit(encoder_block)
    out = jax.block_until_ready(fn(x, wcat, w2, vec))

    assert out.shape == (S, B, E)
    err = float(jnp.max(jnp.abs(out - ref)))
    assert jnp.allclose(out, ref, atol=1e-4, rtol=1e-4), err
    print("KERNEL_OK")
</pallas_src>

<mosaic_0001>
module attributes {stable_mosaic.version = 11 : i64} {
  func.func @encoder_block_kernel(%arg0: i32, %arg1: memref<16x32xf32, #tpu.memory_space<vmem>>, %arg2: memref<32x384xf32, #tpu.memory_space<vmem>>, %arg3: memref<64x32xf32, #tpu.memory_space<vmem>>, %arg4: memref<4x128xf32, #tpu.memory_space<vmem>>, %arg5: memref<16x32xf32, #tpu.memory_space<vmem>>) attributes {dimension_semantics = [#tpu.dimension_semantics<arbitrary>], iteration_bounds = array<i64: 1>, scalar_prefetch = 0 : i64, scratch_operands = 0 : i64, tpu.core_type = #tpu.core_type<tc>, window_params = [{pipeline_mode = #tpu.pipeline_mode<synchronous>, transform_indices = @transform_0, window_bounds = array<i64: 16, 32>}, {pipeline_mode = #tpu.pipeline_mode<synchronous>, transform_indices = @transform_1, window_bounds = array<i64: 32, 384>}, {pipeline_mode = #tpu.pipeline_mode<synchronous>, transform_indices = @transform_2, window_bounds = array<i64: 64, 32>}, {pipeline_mode = #tpu.pipeline_mode<synchronous>, transform_indices = @transform_3, window_bounds = array<i64: 4, 128>}, {pipeline_mode = #tpu.pipeline_mode<synchronous>, transform_indices = @transform_4, window_bounds = array<i64: 16, 32>}]} {
    %c0 = arith.constant 0 : index
    %c0_0 = arith.constant 0 : index
    %0 = vector.load %arg1[%c0, %c0_0] : memref<16x32xf32, #tpu.memory_space<vmem>>, vector<16x32xf32>
    %c0_1 = arith.constant 0 : index
    %c0_2 = arith.constant 0 : index
    %1 = vector.load %arg2[%c0_1, %c0_2] : memref<32x384xf32, #tpu.memory_space<vmem>>, vector<32x384xf32>
    %2 = vector.extract_strided_slice %1 {offsets = [0, 0], sizes = [32, 96], strides = [1, 1]} : vector<32x384xf32> to vector<32x96xf32>
    %3 = vector.extract_strided_slice %1 {offsets = [0, 128], sizes = [32, 32], strides = [1, 1]} : vector<32x384xf32> to vector<32x32xf32>
    %4 = vector.extract_strided_slice %1 {offsets = [0, 256], sizes = [32, 64], strides = [1, 1]} : vector<32x384xf32> to vector<32x64xf32>
    %c0_3 = arith.constant 0 : index
    %c0_4 = arith.constant 0 : index
    %5 = vector.load %arg3[%c0_3, %c0_4] : memref<64x32xf32, #tpu.memory_space<vmem>>, vector<64x32xf32>
    %c0_5 = arith.constant 0 : index
    %c0_6 = arith.constant 0 : index
    %6 = vector.load %arg4[%c0_5, %c0_6] : memref<4x128xf32, #tpu.memory_space<vmem>>, vector<4x128xf32>
    %7 = vector.extract_strided_slice %6 {offsets = [0, 0], sizes = [1, 96], strides = [1, 1]} : vector<4x128xf32> to vector<1x96xf32>
    %8 = vector.extract_strided_slice %6 {offsets = [1, 0], sizes = [1, 32], strides = [1, 1]} : vector<4x128xf32> to vector<1x32xf32>
    %9 = vector.extract_strided_slice %6 {offsets = [2, 0], sizes = [1, 64], strides = [1, 1]} : vector<4x128xf32> to vector<1x64xf32>
    %10 = vector.extract_strided_slice %6 {offsets = [3, 0], sizes = [1, 32], strides = [1, 1]} : vector<4x128xf32> to vector<1x32xf32>
    %cst = arith.constant dense<0.000000e+00> : vector<16xf32>
    %11 = vector.multi_reduction <add>, %0, %cst [1] : vector<16x32xf32> to vector<16xf32>
    %12 = vector.shape_cast %11 : vector<16xf32> to vector<16x1xf32>
    %cst_7 = arith.constant 3.200000e+01 : f32
    %13 = vector.broadcast %cst_7 : f32 to vector<16x1xf32>
    %14 = arith.divf %12, %13 : vector<16x1xf32>
    %15 = vector.broadcast %14 : vector<16x1xf32> to vector<16x32xf32>
    %16 = arith.subf %0, %15 : vector<16x32xf32>
    %17 = arith.mulf %16, %16 : vector<16x32xf32>
    %cst_8 = arith.constant dense<0.000000e+00> : vector<16xf32>
    %18 = vector.multi_reduction <add>, %17, %cst_8 [1] : vector<16x32xf32> to vector<16xf32>
    %19 = vector.shape_cast %18 : vector<16xf32> to vector<16x1xf32>
    %cst_9 = arith.constant 3.200000e+01 : f32
    %20 = vector.broadcast %cst_9 : f32 to vector<16x1xf32>
    %21 = arith.divf %19, %20 : vector<16x1xf32>
    %22 = vector.broadcast %14 : vector<16x1xf32> to vector<16x32xf32>
    %23 = arith.subf %0, %22 : vector<16x32xf32>
    %cst_10 = arith.constant 9.99999974E-6 : f32
    %24 = vector.broadcast %cst_10 : f32 to vector<16x1xf32>
    %25 = arith.addf %21, %24 : vector<16x1xf32>
    %26 = math.rsqrt %25 : vector<16x1xf32>
    %27 = vector.broadcast %26 : vector<16x1xf32> to vector<16x32xf32>
    %28 = arith.mulf %23, %27 : vector<16x32xf32>
    %cst_11 = arith.constant dense<0.000000e+00> : vector<16x96xf32>
    %29 = tpu.matmul %28, %2, %cst_11 {dimension_numbers = #tpu.dot_dimension_numbers<[1], [0], [0], [1], [0, 0, 1, 1], [], []>} : vector<16x32xf32>, vector<32x96xf32>, vector<16x96xf32> -> vector<16x96xf32>
    %30 = vector.broadcast %7 : vector<1x96xf32> to vector<16x96xf32>
    %31 = arith.addf %29, %30 : vector<16x96xf32>
    %32 = tpu.iota {dimensions = array<i32: 0>} : vector<16x16xi32>
    %c1_i32 = arith.constant 1 : i32
    %33 = vector.broadcast %c1_i32 : i32 to vector<16x16xi32>
    %34 = arith.andi %32, %33 : vector<16x16xi32>
    %35 = tpu.iota {dimensions = array<i32: 1>} : vector<16x16xi32>
    %c1_i32_12 = arith.constant 1 : i32
    %36 = vector.broadcast %c1_i32_12 : i32 to vector<16x16xi32>
    %37 = arith.andi %35, %36 : vector<16x16xi32>
    %38 = arith.cmpi eq, %34, %37 : vector<16x16xi32>
    %cst_13 = arith.constant 0.000000e+00 : f32
    %cst_14 = arith.constant -1.000000e+30 : f32
    %39 = vector.broadcast %cst_13 : f32 to vector<16x16xf32>
    %40 = vector.broadcast %cst_14 : f32 to vector<16x16xf32>
    %41 = arith.select %38, %39, %40 : vector<16x16xi1>, vector<16x16xf32>
    %cst_15 = arith.constant 0.000000e+00 : f32
    %42 = vector.broadcast %cst_15 : f32 to vector<16x32xf32>
    %43 = vector.extract_strided_slice %31 {offsets = [0, 0], sizes = [16, 8], strides = [1, 1]} : vector<16x96xf32> to vector<16x8xf32>
    %44 = vector.extract_strided_slice %31 {offsets = [0, 32], sizes = [16, 8], strides = [1, 1]} : vector<16x96xf32> to vector<16x8xf32>
    %45 = vector.extract_strided_slice %31 {offsets = [0, 64], sizes = [16, 8], strides = [1, 1]} : vector<16x96xf32> to vector<16x8xf32>
    %cst_16 = arith.constant dense<0.000000e+00> : vector<16x16xf32>
    %46 = tpu.matmul %43, %44, %cst_16 {dimension_numbers = #tpu.dot_dimension_numbers<[1], [1], [0], [0], [0, 0, 1, 0], [], []>} : vector<16x8xf32>, vector<16x8xf32>, vector<16x16xf32> -> vector<16x16xf32>
    %47 = arith.addf %46, %41 : vector<16x16xf32>
    %cst_17 = arith.constant dense<0xFF800000> : vector<16xf32>
    %48 = vector.multi_reduction <maximumf>, %47, %cst_17 [1] : vector<16x16xf32> to vector<16xf32>
    %49 = vector.shape_cast %48 : vector<16xf32> to vector<16x1xf32>
    %50 = vector.broadcast %49 : vector<16x1xf32> to vector<16x16xf32>
    %51 = arith.subf %47, %50 : vector<16x16xf32>
    %52 = math.exp %51 : vector<16x16xf32>
    %cst_18 = arith.constant dense<0.000000e+00> : vector<16xf32>
    %53 = vector.multi_reduction <add>, %52, %cst_18 [1] : vector<16x16xf32> to vector<16xf32>
    %54 = vector.shape_cast %53 : vector<16xf32> to vector<16x1xf32>
    %55 = tpu.reciprocal %54 : vector<16x1xf32> -> vector<16x1xf32>
    %56 = vector.broadcast %55 : vector<16x1xf32> to vector<16x16xf32>
    %57 = arith.mulf %52, %56 : vector<16x16xf32>
    %cst_19 = arith.constant dense<0.000000e+00> : vector<16x8xf32>
    %58 = tpu.matmul %57, %45, %cst_19 {dimension_numbers = #tpu.dot_dimension_numbers<[1], [0], [0], [1], [0, 0, 1, 1], [], []>} : vector<16x16xf32>, vector<16x8xf32>, vector<16x8xf32> -> vector<16x8xf32>
    %59 = vector.extract_strided_slice %3 {offsets = [0, 0], sizes = [8, 32], strides = [1, 1]} : vector<32x32xf32> to vector<8x32xf32>
    %cst_20 = arith.constant dense<0.000000e+00> : vector<16x32xf32>
    %60 = tpu.matmul %58, %59, %cst_20 {dimension_numbers = #tpu.dot_dimension_numbers<[1], [0], [0], [1], [0, 0, 1, 1], [], []>} : vector<16x8xf32>, vector<8x32xf32>, vector<16x32xf32> -> vector<16x32xf32>
    %61 = arith.addf %42, %60 : vector<16x32xf32>
    %62 = vector.extract_strided_slice %31 {offsets = [0, 8], sizes = [16, 8], strides = [1, 1]} : vector<16x96xf32> to vector<16x8xf32>
    %63 = vector.extract_strided_slice %31 {offsets = [0, 40], sizes = [16, 8], strides = [1, 1]} : vector<16x96xf32> to vector<16x8xf32>
    %64 = vector.extract_strided_slice %31 {offsets = [0, 72], sizes = [16, 8], strides = [1, 1]} : vector<16x96xf32> to vector<16x8xf32>
    %cst_21 = arith.constant dense<0.000000e+00> : vector<16x16xf32>
    %65 = tpu.matmul %62, %63, %cst_21 {dimension_numbers = #tpu.dot_dimension_numbers<[1], [1], [0], [0], [0, 0, 1, 0], [], []>} : vector<16x8xf32>, vector<16x8xf32>, vector<16x16xf32> -> vector<16x16xf32>
    %66 = arith.addf %65, %41 : vector<16x16xf32>
    %cst_22 = arith.constant dense<0xFF800000> : vector<16xf32>
    %67 = vector.multi_reduction <maximumf>, %66, %cst_22 [1] : vector<16x16xf32> to vector<16xf32>
    %68 = vector.shape_cast %67 : vector<16xf32> to vector<16x1xf32>
    %69 = vector.broadcast %68 : vector<16x1xf32> to vector<16x16xf32>
    %70 = arith.subf %66, %69 : vector<16x16xf32>
    %71 = math.exp %70 : vector<16x16xf32>
    %cst_23 = arith.constant dense<0.000000e+00> : vector<16xf32>
    %72 = vector.multi_reduction <add>, %71, %cst_23 [1] : vector<16x16xf32> to vector<16xf32>
    %73 = vector.shape_cast %72 : vector<16xf32> to vector<16x1xf32>
    %74 = tpu.reciprocal %73 : vector<16x1xf32> -> vector<16x1xf32>
    %75 = vector.broadcast %74 : vector<16x1xf32> to vector<16x16xf32>
    %76 = arith.mulf %71, %75 : vector<16x16xf32>
    %cst_24 = arith.constant dense<0.000000e+00> : vector<16x8xf32>
    %77 = tpu.matmul %76, %64, %cst_24 {dimension_numbers = #tpu.dot_dimension_numbers<[1], [0], [0], [1], [0, 0, 1, 1], [], []>} : vector<16x16xf32>, vector<16x8xf32>, vector<16x8xf32> -> vector<16x8xf32>
    %78 = vector.extract_strided_slice %3 {offsets = [8, 0], sizes = [8, 32], strides = [1, 1]} : vector<32x32xf32> to vector<8x32xf32>
    %cst_25 = arith.constant dense<0.000000e+00> : vector<16x32xf32>
    %79 = tpu.matmul %77, %78, %cst_25 {dimension_numbers = #tpu.dot_dimension_numbers<[1], [0], [0], [1], [0, 0, 1, 1], [], []>} : vector<16x8xf32>, vector<8x32xf32>, vector<16x32xf32> -> vector<16x32xf32>
    %80 = arith.addf %61, %79 : vector<16x32xf32>
    %81 = vector.extract_strided_slice %31 {offsets = [0, 16], sizes = [16, 8], strides = [1, 1]} : vector<16x96xf32> to vector<16x8xf32>
    %82 = vector.extract_strided_slice %31 {offsets = [0, 48], sizes = [16, 8], strides = [1, 1]} : vector<16x96xf32> to vector<16x8xf32>
    %83 = vector.extract_strided_slice %31 {offsets = [0, 80], sizes = [16, 8], strides = [1, 1]} : vector<16x96xf32> to vector<16x8xf32>
    %cst_26 = arith.constant dense<0.000000e+00> : vector<16x16xf32>
    %84 = tpu.matmul %81, %82, %cst_26 {dimension_numbers = #tpu.dot_dimension_numbers<[1], [1], [0], [0], [0, 0, 1, 0], [], []>} : vector<16x8xf32>, vector<16x8xf32>, vector<16x16xf32> -> vector<16x16xf32>
    %85 = arith.addf %84, %41 : vector<16x16xf32>
    %cst_27 = arith.constant dense<0xFF800000> : vector<16xf32>
    %86 = vector.multi_reduction <maximumf>, %85, %cst_27 [1] : vector<16x16xf32> to vector<16xf32>
    %87 = vector.shape_cast %86 : vector<16xf32> to vector<16x1xf32>
    %88 = vector.broadcast %87 : vector<16x1xf32> to vector<16x16xf32>
    %89 = arith.subf %85, %88 : vector<16x16xf32>
    %90 = math.exp %89 : vector<16x16xf32>
    %cst_28 = arith.constant dense<0.000000e+00> : vector<16xf32>
    %91 = vector.multi_reduction <add>, %90, %cst_28 [1] : vector<16x16xf32> to vector<16xf32>
    %92 = vector.shape_cast %91 : vector<16xf32> to vector<16x1xf32>
    %93 = tpu.reciprocal %92 : vector<16x1xf32> -> vector<16x1xf32>
    %94 = vector.broadcast %93 : vector<16x1xf32> to vector<16x16xf32>
    %95 = arith.mulf %90, %94 : vector<16x16xf32>
    %cst_29 = arith.constant dense<0.000000e+00> : vector<16x8xf32>
    %96 = tpu.matmul %95, %83, %cst_29 {dimension_numbers = #tpu.dot_dimension_numbers<[1], [0], [0], [1], [0, 0, 1, 1], [], []>} : vector<16x16xf32>, vector<16x8xf32>, vector<16x8xf32> -> vector<16x8xf32>
    %97 = vector.extract_strided_slice %3 {offsets = [16, 0], sizes = [8, 32], strides = [1, 1]} : vector<32x32xf32> to vector<8x32xf32>
    %cst_30 = arith.constant dense<0.000000e+00> : vector<16x32xf32>
    %98 = tpu.matmul %96, %97, %cst_30 {dimension_numbers = #tpu.dot_dimension_numbers<[1], [0], [0], [1], [0, 0, 1, 1], [], []>} : vector<16x8xf32>, vector<8x32xf32>, vector<16x32xf32> -> vector<16x32xf32>
    %99 = arith.addf %80, %98 : vector<16x32xf32>
    %100 = vector.extract_strided_slice %31 {offsets = [0, 24], sizes = [16, 8], strides = [1, 1]} : vector<16x96xf32> to vector<16x8xf32>
    %101 = vector.extract_strided_slice %31 {offsets = [0, 56], sizes = [16, 8], strides = [1, 1]} : vector<16x96xf32> to vector<16x8xf32>
    %102 = vector.extract_strided_slice %31 {offsets = [0, 88], sizes = [16, 8], strides = [1, 1]} : vector<16x96xf32> to vector<16x8xf32>
    %cst_31 = arith.constant dense<0.000000e+00> : vector<16x16xf32>
    %103 = tpu.matmul %100, %101, %cst_31 {dimension_numbers = #tpu.dot_dimension_numbers<[1], [1], [0], [0], [0, 0, 1, 0], [], []>} : vector<16x8xf32>, vector<16x8xf32>, vector<16x16xf32> -> vector<16x16xf32>
    %104 = arith.addf %103, %41 : vector<16x16xf32>
    %cst_32 = arith.constant dense<0xFF800000> : vector<16xf32>
    %105 = vector.multi_reduction <maximumf>, %104, %cst_32 [1] : vector<16x16xf32> to vector<16xf32>
    %106 = vector.shape_cast %105 : vector<16xf32> to vector<16x1xf32>
    %107 = vector.broadcast %106 : vector<16x1xf32> to vector<16x16xf32>
    %108 = arith.subf %104, %107 : vector<16x16xf32>
    %109 = math.exp %108 : vector<16x16xf32>
    %cst_33 = arith.constant dense<0.000000e+00> : vector<16xf32>
    %110 = vector.multi_reduction <add>, %109, %cst_33 [1] : vector<16x16xf32> to vector<16xf32>
    %111 = vector.shape_cast %110 : vector<16xf32> to vector<16x1xf32>
    %112 = tpu.reciprocal %111 : vector<16x1xf32> -> vector<16x1xf32>
    %113 = vector.broadcast %112 : vector<16x1xf32> to vector<16x16xf32>
    %114 = arith.mulf %109, %113 : vector<16x16xf32>
    %cst_34 = arith.constant dense<0.000000e+00> : vector<16x8xf32>
    %115 = tpu.matmul %114, %102, %cst_34 {dimension_numbers = #tpu.dot_dimension_numbers<[1], [0], [0], [1], [0, 0, 1, 1], [], []>} : vector<16x16xf32>, vector<16x8xf32>, vector<16x8xf32> -> vector<16x8xf32>
    %116 = vector.extract_strided_slice %3 {offsets = [24, 0], sizes = [8, 32], strides = [1, 1]} : vector<32x32xf32> to vector<8x32xf32>
    %cst_35 = arith.constant dense<0.000000e+00> : vector<16x32xf32>
    %117 = tpu.matmul %115, %116, %cst_35 {dimension_numbers = #tpu.dot_dimension_numbers<[1], [0], [0], [1], [0, 0, 1, 1], [], []>} : vector<16x8xf32>, vector<8x32xf32>, vector<16x32xf32> -> vector<16x32xf32>
    %118 = arith.addf %99, %117 : vector<16x32xf32>
    %119 = vector.broadcast %8 : vector<1x32xf32> to vector<16x32xf32>
    %120 = arith.addf %118, %119 : vector<16x32xf32>
    %121 = arith.addf %120, %0 : vector<16x32xf32>
    %cst_36 = arith.constant dense<0.000000e+00> : vector<16xf32>
    %122 = vector.multi_reduction <add>, %121, %cst_36 [1] : vector<16x32xf32> to vector<16xf32>
    %123 = vector.shape_cast %122 : vector<16xf32> to vector<16x1xf32>
    %cst_37 = arith.constant 3.200000e+01 : f32
    %124 = vector.broadcast %cst_37 : f32 to vector<16x1xf32>
    %125 = arith.divf %123, %124 : vector<16x1xf32>
    %126 = vector.broadcast %125 : vector<16x1xf32> to vector<16x32xf32>
    %127 = arith.subf %121, %126 : vector<16x32xf32>
    %128 = arith.mulf %127, %127 : vector<16x32xf32>
    %cst_38 = arith.constant dense<0.000000e+00> : vector<16xf32>
    %129 = vector.multi_reduction <add>, %128, %cst_38 [1] : vector<16x32xf32> to vector<16xf32>
    %130 = vector.shape_cast %129 : vector<16xf32> to vector<16x1xf32>
    %cst_39 = arith.constant 3.200000e+01 : f32
    %131 = vector.broadcast %cst_39 : f32 to vector<16x1xf32>
    %132 = arith.divf %130, %131 : vector<16x1xf32>
    %133 = vector.broadcast %125 : vector<16x1xf32> to vector<16x32xf32>
    %134 = arith.subf %121, %133 : vector<16x32xf32>
    %cst_40 = arith.constant 9.99999974E-6 : f32
    %135 = vector.broadcast %cst_40 : f32 to vector<16x1xf32>
    %136 = arith.addf %132, %135 : vector<16x1xf32>
    %137 = math.rsqrt %136 : vector<16x1xf32>
    %138 = vector.broadcast %137 : vector<16x1xf32> to vector<16x32xf32>
    %139 = arith.mulf %134, %138 : vector<16x32xf32>
    %cst_41 = arith.constant dense<0.000000e+00> : vector<16x64xf32>
    %140 = tpu.matmul %139, %4, %cst_41 {dimension_numbers = #tpu.dot_dimension_numbers<[1], [0], [0], [1], [0, 0, 1, 1], [], []>} : vector<16x32xf32>, vector<32x64xf32>, vector<16x64xf32> -> vector<16x64xf32>
    %141 = vector.broadcast %9 : vector<1x64xf32> to vector<16x64xf32>
    %142 = arith.addf %140, %141 : vector<16x64xf32>
    %cst_42 = arith.constant 0.000000e+00 : f32
    %143 = vector.broadcast %cst_42 : f32 to vector<16x64xf32>
    %144 = arith.maximumf %142, %143 : vector<16x64xf32>
    %cst_43 = arith.constant dense<0.000000e+00> : vector<16x32xf32>
    %145 = tpu.matmul %144, %5, %cst_43 {dimension_numbers = #tpu.dot_dimension_numbers<[1], [0], [0], [1], [0, 0, 1, 1], [], []>} : vector<16x64xf32>, vector<64x32xf32>, vector<16x32xf32> -> vector<16x32xf32>
    %146 = vector.broadcast %10 : vector<1x32xf32> to vector<16x32xf32>
    %147 = arith.addf %145, %146 : vector<16x32xf32>
    %148 = arith.addf %147, %121 : vector<16x32xf32>
    %c0_44 = arith.constant 0 : index
    %c0_45 = arith.constant 0 : index
    %149 = vector.load %arg5[%c0_44, %c0_45] : memref<16x32xf32, #tpu.memory_space<vmem>>, vector<16x32xf32>
    tpu.vector_store %arg5[%c0_44, %c0_45], %148 {strides = array<i32>} : memref<16x32xf32, #tpu.memory_space<vmem>>, vector<16x32xf32>,
    return
  }
  func.func @transform_0(%arg0: i32) -> (i32, i32) {
    %c0_i32 = arith.constant 0 : i32
    %c0_i32_0 = arith.constant 0 : i32
    %c0_i32_1 = arith.constant 0 : i32
    return %c0_i32, %c0_i32_0 : i32, i32
  }
  func.func @transform_1(%arg0: i32) -> (i32, i32) {
    %c0_i32 = arith.constant 0 : i32
    %c0_i32_0 = arith.constant 0 : i32
    %c0_i32_1 = arith.constant 0 : i32
    return %c0_i32, %c0_i32_0 : i32, i32
  }
  func.func @transform_2(%arg0: i32) -> (i32, i32) {
    %c0_i32 = arith.constant 0 : i32
    %c0_i32_0 = arith.constant 0 : i32
    %c0_i32_1 = arith.constant 0 : i32
    return %c0_i32, %c0_i32_0 : i32, i32
  }
  func.func @transform_3(%arg0: i32) -> (i32, i32) {
    %c0_i32 = arith.constant 0 : i32
    %c0_i32_0 = arith.constant 0 : i32
    %c0_i32_1 = arith.constant 0 : i32
    return %c0_i32, %c0_i32_0 : i32, i32
  }
  func.func @transform_4(%arg0: i32) -> (i32, i32) {
    %c0_i32 = arith.constant 0 : i32
    %c0_i32_0 = arith.constant 0 : i32
    %c0_i32_1 = arith.constant 0 : i32
    return %c0_i32, %c0_i32_0 : i32, i32
  }
}

</mosaic_0001>

<llo_original>
// kernel: encoder_block.1
$region0: #{encoder_block.1}
  #allocation0 [shape = 'u32[]', space=smem, size = 0x4, offset = 0x4, fixed_abs, tag = 'smem constant byte address 0x4 - core index']
  #allocation1 [shape = 'u32[72,128]{1,0:T(1,128)}', space=vmem, size = 0x9000, scoped, tag = 'internal scratch']
  %s0 = inlined_call_operand.hbm [shape: f32[16,32], index: 0, kind: input, shape index: {}]
  %s1 = inlined_call_operand.vmem [shape: f32[32,384], index: 1, kind: input, shape index: {}]
  %s2 = inlined_call_operand.vmem [shape: f32[64,32], index: 2, kind: input, shape index: {}]
  %s3 = inlined_call_operand.hbm [shape: f32[4,128], index: 3, kind: input, shape index: {}]
  %s4 = inlined_call_operand.hbm [shape: f32[16,32], index: 4, kind: output, shape index: {}]
  %s5 = sld [smem:[#allocation0]]
  $region34: #{encoder_block.1} parent=0
    _
  %s7 = ssub.s32 1, %s5
  %s8 = scalar_select 0, %s7, %s5
  $region1: #{encoder_block.1} parent=0
    #allocation2 [shape = 'u8[8192]{0}', space=vmem, size = 0x2000, scoped, tag = 'input window, operand 0, single buffered']
    #allocation3 [shape = 's32[1]{0}', space=sflag, size = 0x4, scoped, tag = 'scoped memory for encoder_block.1']
    #allocation4 [shape = 's32[1]{0}', space=sflag, size = 0x4, scoped, tag = 'scoped memory for encoder_block.1']
    #allocation5 [shape = 'u8[2048]{0}', space=vmem, size = 0x800, scoped, tag = 'input window, operand 3, single buffered']
    #allocation6 [shape = 's32[1]{0}', space=sflag, size = 0x4, scoped, tag = 'scoped memory for encoder_block.1']
    #allocation7 [shape = 'u8[8192]{0}', space=vmem, size = 0x2000, scoped, tag = 'output window, operand 0, single buffered']
    %9 = vsyncpa [#allocation3], 0
    %10 = vsyncpa [#allocation6], 0
    %11 = vsyncpa [#allocation4], 0
    // Predicated region
    $region2: #{encoder_block.1} parent=1 // pred_check
      _
    $region3: #{encoder_block.1} parent=1 // pred_check_branch
      %13 = sbr.rel (0) target = $region5
    $region4: #{encoder_block.1} parent=1 // pred_region
      %15 = vsyncadd [#allocation3], 0
      %s16 = sshll.u32 %s0, 4
      %s17 = int_to_ptr.hbm [resolvable:$true] %s16
      %s18 = sshll.u32 [#allocation2], 4
      %s19 = int_to_ptr.vmem [resolvable:$true] %s18
      %24 = dma.hbm_to_vmem [thread:$0]  %s17, 256, %s19, [#allocation3], 128, 128, 8
    $region5: #{encoder_block.1} parent=1 // pred_fallthru
      _
    // Predicated region
    $region6: #{encoder_block.1} parent=1 // pred_check
      _
    $region7: #{encoder_block.1} parent=1 // pred_check_branch
      %26 = sbr.rel (0) target = $region9
    $region8: #{encoder_block.1} parent=1 // pred_region
      _
    $region9: #{encoder_block.1} parent=1 // pred_fallthru
      _
    // Predicated region
    $region10: #{encoder_block.1} parent=1 // pred_check
      _
    $region11: #{encoder_block.1} parent=1 // pred_check_branch
      %28 = sbr.rel (0) target = $region13
    $region12: #{encoder_block.1} parent=1 // pred_region
      _
    $region13: #{encoder_block.1} parent=1 // pred_fallthru
      _
    // Predicated region
    $region14: #{encoder_block.1} parent=1 // pred_check
      _
    $region15: #{encoder_block.1} parent=1 // pred_check_branch
      %30 = sbr.rel (0) target = $region17
    $region16: #{encoder_block.1} parent=1 // pred_region
      %32 = vsyncadd [#allocation6], 0
      %s34 = sshll.u32 %s3, 4
      %s35 = int_to_ptr.hbm [resolvable:$true] %s34
      %s36 = sshll.u32 [#allocation5], 4
      %s37 = int_to_ptr.vmem [resolvable:$true] %s36
      %39 = dma.hbm_to_vmem [thread:$0]  %s35, 64, %s37, [#allocation6]
    $region17: #{encoder_block.1} parent=1 // pred_fallthru
      _
    // Predicated region
    $region18: #{encoder_block.1} parent=1 // pred_check
      _
    $region19: #{encoder_block.1} parent=1 // pred_check_branch
      %41 = sbr.rel (0) target = $region21
    $region20: #{encoder_block.1} parent=1 // pred_region
      %43 = dma.done [#allocation3], 256
    $region21: #{encoder_block.1} parent=1 // pred_fallthru
      _
    // Predicated region
    $region22: #{encoder_block.1} parent=1 // pred_check
      _
    $region23: #{encoder_block.1} parent=1 // pred_check_branch
      %45 = sbr.rel (0) target = $region25
    $region24: #{encoder_block.1} parent=1 // pred_region
      %47 = dma.done [#allocation6], 64
    $region25: #{encoder_block.1} parent=1 // pred_fallthru
      _
    %v48 = vld [vmem:[#allocation2] sm:$0xff]
    %v49 = vld [vmem:[#allocation2 + $0x8] sm:$0xff]
    %v50 = vld [vmem:[%s1] sm:$0xff]
    %v51 = vld [vmem:[%s1 + $0x8] sm:$0xff]
    %v52 = vld [vmem:[%s1 + $0x10] sm:$0xff]
    %v53 = vld [vmem:[%s1 + $0x18] sm:$0xff]
    %v54 = vld [vmem:[%s1 + $0x20] sm:$0xff]
    %v55 = vld [vmem:[%s1 + $0x28] sm:$0xff]
    %v56 = vld [vmem:[%s1 + $0x30] sm:$0xff]
    %v57 = vld [vmem:[%s1 + $0x38] sm:$0xff]
    %v58 = vld [vmem:[%s1 + $0x40] sm:$0xff]
    %v59 = vld [vmem:[%s1 + $0x48] sm:$0xff]
    %v60 = vld [vmem:[%s1 + $0x50] sm:$0xff]
    %v61 = vld [vmem:[%s1 + $0x58] sm:$0xff]
    %v62 = vld [vmem:[%s2] sm:$0xff]
    %v63 = vld [vmem:[%s2 + $0x8] sm:$0xff]
    %v64 = vld [vmem:[%s2 + $0x10] sm:$0xff]
    %v65 = vld [vmem:[%s2 + $0x18] sm:$0xff]
    %v66 = vld [vmem:[%s2 + $0x20] sm:$0xff]
    %v67 = vld [vmem:[%s2 + $0x28] sm:$0xff]
    %v68 = vld [vmem:[%s2 + $0x30] sm:$0xff]
    %v69 = vld [vmem:[%s2 + $0x38] sm:$0xff]
    %v70 = vld [vmem:[#allocation5] sm:$0xf]
    %vm71 = vcmask 261120
    %v72 = vsel %vm71, %v48, 0.0
    %73 = vadd.xlane.f32.xlu0 %v72
    %v74 = vpop.xlane.xlu0 %73
    %v75 = vsel %vm71, %v49, 0.0
    %76 = vadd.xlane.f32.xlu0 %v75
    %v77 = vpop.xlane.xlu0 %76
    %v78 = vrcp.pop 32.0
    %v79 = vmul.f32 32.0, %v78
    %v80 = vsub.f32 1.0, %v79
    %v81 = vmul.f32 %v78, %v80
    %v82 = vadd.f32 %v78, %v81
    %vm83 = vweird.f32 %v78
    %v84 = vsel %vm83, %v78, %v82
    %v85 = vmul.f32 %v74, %v84
    %v86 = vmul.f32 %v77, %v84
    %v87 = vsub.f32 %v48, %v85
    %v88 = vsub.f32 %v49, %v86
    %v89 = vmul.f32 %v87, %v87
    %v90 = vmul.f32 %v88, %v88
    %v91 = vsel %vm71, %v89, 0.0
    %92 = vadd.xlane.f32.xlu0 %v91
    %v93 = vpop.xlane.xlu0 %92
    %v94 = vsel %vm71, %v90, 0.0
    %95 = vadd.xlane.f32.xlu0 %v94
    %v96 = vpop.xlane.xlu0 %95
    %v97 = vmul.f32 %v93, %v84
    %v98 = vmul.f32 %v96, %v84
    %v99 = vadd.f32 %v97, 1e-05
    %v100 = vadd.f32 %v98, 1e-05
    %v101 = vrsqrt.pop %v99
    %v102 = vmul.f32 %v101, %v99
    %v103 = vmul.f32 %v102, %v101
    %v104 = vmul.f32 0.5, %v103
    %v105 = vsub.f32 1.5, %v104
    %v106 = vmul.f32 %v101, %v105
    %vm107 = vweird.f32 %v99
    %vm108 = vweird.f32 %v101
    %vm109 = vmor %vm107, %vm108
    %v110 = vsel %vm109, %v101, %v106
    %v111 = vrsqrt.pop %v100
    %v112 = vmul.f32 %v111, %v100
    %v113 = vmul.f32 %v112, %v111
    %v114 = vmul.f32 0.5, %v113
    %v115 = vsub.f32 1.5, %v114
    %v116 = vmul.f32 %v111, %v115
    %vm117 = vweird.f32 %v100
    %vm118 = vweird.f32 %v111
    %vm119 = vmor %vm117, %vm118
    %v120 = vsel %vm119, %v111, %v116
    %v121 = vmul.f32 %v87, %v110
    %v122 = vmul.f32 %v88, %v120
    %v123 = vperm.slane %v70, 0
    %v125 = vsel %vm71, %v121, 0
    %v128 = vsel %vm71, %v122, 0
    %130 = vmatpush.msra.mxu0 0.0
    %131 = vmatpush.msra.mxu0 0.0
    %132 = vmatpush.msra.mxu0 0.0
    %133 = vmatpush.msra.mxu0 0.0
    %134 = vmatpush.msra.mxu0 0.0
    %135 = vmatpush.msra.mxu0 0.0
    %136 = vmatpush.msra.mxu0 0.0
    %137 = vmatpush.msra.mxu0 0.0
    %138 = vmatpush.msra.mxu0 0.0
    %139 = vmatpush.msra.mxu0 0.0
    %140 = vmatpush.msra.mxu0 0.0
    %141 = vmatpush.msra.mxu0 0.0
    %142 = vmatpush.msra.mxu0 %v59
    %143 = vmatpush.msra.mxu0 %v56
    %144 = vmatpush.msra.mxu0 %v53
    %145 = vmatpush.msra.mxu0 %v50
    %146 = vmatmul.f32.gmra.mxu0 %v125
    %v147 = vpop.f32.mrf.mxu0
    %v148 = vadd.f32 %v123, %v147
    %149 = vmatmul.f32.gmra.mxu0 %v128
    %v150 = vpop.f32.mrf.mxu0
    %v151 = vadd.f32 %v123, %v150
    %152 = vdwg.mxu0
    %v153 = vlaneseq
    %v154 = vshrl.u32 %v153, 7
    %v155 = vadd.s32 %v154, 8
    %v156 = vand.u32 %v154, 1
    %v157 = vand.u32 %v155, 1
    %v158 = vlaneseq
    %v159 = vand.u32 %v158, 127
    %v160 = vand.u32 %v159, 1
    %vm161 = vcmp.eq.s32.totalorder %v156, %v160
    %vm162 = vcmp.eq.s32.totalorder %v157, %v160
    %v163 = vsel %vm161, 0.0, -1e+30
    %v164 = vsel %vm162, 0.0, -1e+30
    %167 = vrot.lane.b32.xlu0 %v148, 96
    %v168 = vpop.permute.xlu0 %167
    %169 = vrot.lane.b32.xlu0 %v151, 96
    %v170 = vpop.permute.xlu0 %169
    %vm171 = vcmask 64512
    %v172 = vsel %vm171, %v148, 0
    %v174 = vsel %vm171, %v151, 0
    %v176 = vsel %vm171, %v168, 0
    %v178 = vsel %vm171, %v170, 0
    %180 = vmatpush.xpose.msra.mxu0 0.0
    %181 = vmatpush.xpose.msra.mxu0 0.0
    %182 = vmatpush.xpose.msra.mxu0 0.0
    %183 = vmatpush.xpose.msra.mxu0 0.0
    %184 = vmatpush.xpose.msra.mxu0 0.0
    %185 = vmatpush.xpose.msra.mxu0 0.0
    %186 = vmatpush.xpose.msra.mxu0 0.0
    %187 = vmatpush.xpose.msra.mxu0 0.0
    %188 = vmatpush.xpose.msra.mxu0 0.0
    %189 = vmatpush.xpose.msra.mxu0 0.0
    %190 = vmatpush.xpose.msra.mxu0 0.0
    %191 = vmatpush.xpose.msra.mxu0 0.0
    %192 = vmatpush.xpose.msra.mxu0 0.0
    %193 = vmatpush.xpose.msra.mxu0 0.0
    %194 = vmatpush.xpose.msra.mxu0 %v178
    %195 = vmatpush.xpose.msra.mxu0 %v176
    %196 = vmatmul.f32.gmra.mxu0 %v172
    %v197 = vpop.f32.mrf.mxu0
    %v198 = vadd.f32 %v163, %v197
    %199 = vmatmul.f32.gmra.mxu0 %v174
    %v200 = vpop.f32.mrf.mxu0
    %v201 = vadd.f32 %v164, %v200
    %202 = vdwg.mxu0
    %vm203 = vcmask 130048
    %v204 = vsel %vm203, %v198, -inf
    %205 = vmax.xlane.f32.xlu0 %v204
    %v206 = vpop.xlane.xlu0 %205
    %v207 = vsel %vm203, %v201, -inf
    %208 = vmax.xlane.f32.xlu0 %v207
    %v209 = vpop.xlane.xlu0 %208
    %v210 = vsub.f32 %v198, %v206
    %v211 = vsub.f32 %v201, %v209
    %v212 = vmul.f32 %v210, 1.442695
    %v213 = vpow.pop %v212
    %v214 = vmul.f32 %v211, 1.442695
    %v215 = vpow.pop %v214
    %v216 = vsel %vm203, %v213, 0.0
    %217 = vadd.xlane.f32.xlu0 %v216
    %v218 = vpop.xlane.xlu0 %217
    %v219 = vsel %vm203, %v215, 0.0
    %220 = vadd.xlane.f32.xlu0 %v219
    %v221 = vpop.xlane.xlu0 %220
    %v222 = vrcp.pop %v218
    %v223 = vmul.f32 %v218, %v222
    %v224 = vsub.f32 1.0, %v223
    %v225 = vmul.f32 %v222, %v224
    %v226 = vadd.f32 %v222, %v225
    %vm227 = vweird.f32 %v218
    %vm228 = vweird.f32 %v222
    %vm229 = vmor %vm227, %vm228
    %v230 = vsel %vm229, %v222, %v226
    %v231 = vand.u32 2147483647, %v218
    %vm232 = vcmp.eq.f32.partialorder %v231, 8.507059e+37
    %v233 = vand.u32 %v218, 2147483648
    %v234 = vor.u32 1.1754944e-38, %v233
    %v235 = vsel %vm232, %v234, %v230
    %v236 = vrcp.pop %v221
    %v237 = vmul.f32 %v221, %v236
    %v238 = vsub.f32 1.0, %v237
    %v239 = vmul.f32 %v236, %v238
    %v240 = vadd.f32 %v236, %v239
    %vm241 = vweird.f32 %v221
    %vm242 = vweird.f32 %v236
    %vm243 = vmor %vm241, %vm242
    %v244 = vsel %vm243, %v236, %v240
    %v245 = vand.u32 2147483647, %v221
    %vm246 = vcmp.eq.f32.partialorder %v245, 8.507059e+37
    %v247 = vand.u32 %v221, 2147483648
    %v248 = vor.u32 1.1754944e-38, %v247
    %v249 = vsel %vm246, %v248, %v244
    %v250 = vmul.f32 %v213, %v235
    %v251 = vmul.f32 %v215, %v249
    %252 = vrot.lane.b32.xlu0 %v148, 64
    %v253 = vpop.permute.xlu0 %252
    %254 = vrot.lane.b32.xlu0 %v151, 64
    %v255 = vpop.permute.xlu0 %254
    %v259 = vsel %vm203, %v250, 0
    %v262 = vsel %vm203, %v251, 0
    %264 = vmatpush.msra.mxu0 0.0
    %265 = vmatpush.msra.mxu0 0.0
    %266 = vmatpush.msra.mxu0 0.0
    %267 = vmatpush.msra.mxu0 0.0
    %268 = vmatpush.msra.mxu0 0.0
    %269 = vmatpush.msra.mxu0 0.0
    %270 = vmatpush.msra.mxu0 0.0
    %271 = vmatpush.msra.mxu0 0.0
    %272 = vmatpush.msra.mxu0 0.0
    %273 = vmatpush.msra.mxu0 0.0
    %274 = vmatpush.msra.mxu0 0.0
    %275 = vmatpush.msra.mxu0 0.0
    %276 = vmatpush.msra.mxu0 0.0
    %277 = vmatpush.msra.mxu0 0.0
    %278 = vmatpush.msra.mxu0 %v255
    %279 = vmatpush.msra.mxu0 %v253
    %280 = vmatmul.f32.gmra.mxu0 %v259
    %v281 = vpop.f32.mrf.mxu0
    %v282 = vadd.f32 0.0, %v281
    %283 = vmatmul.f32.gmra.mxu0 %v262
    %v284 = vpop.f32.mrf.mxu0
    %v285 = vadd.f32 0.0, %v284
    %286 = vdwg.mxu0
    %287 = vrot.lane.b32.xlu0 %v148, 120
    %v288 = vpop.permute.xlu0 %287
    %289 = vrot.lane.b32.xlu0 %v151, 120
    %v290 = vpop.permute.xlu0 %289
    %291 = vrot.lane.b32.xlu0 %v148, 88
    %v292 = vpop.permute.xlu0 %291
    %293 = vrot.lane.b32.xlu0 %v151, 88
    %v294 = vpop.permute.xlu0 %293
    %v295 = vsel %vm171, %v288, 0
    %v297 = vsel %vm171, %v290, 0
    %v299 = vsel %vm171, %v292, 0
    %v301 = vsel %vm171, %v294, 0
    %303 = vmatpush.xpose.msra.mxu0 0.0
    %304 = vmatpush.xpose.msra.mxu0 0.0
    %305 = vmatpush.xpose.msra.mxu0 0.0
    %306 = vmatpush.xpose.msra.mxu0 0.0
    %307 = vmatpush.xpose.msra.mxu0 0.0
    %308 = vmatpush.xpose.msra.mxu0 0.0
    %309 = vmatpush.xpose.msra.mxu0 0.0
    %310 = vmatpush.xpose.msra.mxu0 0.0
    %311 = vmatpush.xpose.msra.mxu0 0.0
    %312 = vmatpush.xpose.msra.mxu0 0.0
    %313 = vmatpush.xpose.msra.mxu0 0.0
    %314 = vmatpush.xpose.msra.mxu0 0.0
    %315 = vmatpush.xpose.msra.mxu0 0.0
    %316 = vmatpush.xpose.msra.mxu0 0.0
    %317 = vmatpush.xpose.msra.mxu0 %v301
    %318 = vmatpush.xpose.msra.mxu0 %v299
    %319 = vmatmul.f32.gmra.mxu0 %v295
    %v320 = vpop.f32.mrf.mxu0
    %v321 = vadd.f32 %v163, %v320
    %322 = vmatmul.f32.gmra.mxu0 %v297
    %v323 = vpop.f32.mrf.mxu0
    %v324 = vadd.f32 %v164, %v323
    %325 = vdwg.mxu0
    %v326 = vsel %vm203, %v321, -inf
    %327 = vmax.xlane.f32.xlu0 %v326
    %v328 = vpop.xlane.xlu0 %327
    %v329 = vsel %vm203, %v324, -inf
    %330 = vmax.xlane.f32.xlu0 %v329
    %v331 = vpop.xlane.xlu0 %330
    %v332 = vsub.f32 %v321, %v328
    %v333 = vsub.f32 %v324, %v331
    %v334 = vmul.f32 %v332, 1.442695
    %v335 = vpow.pop %v334
    %v336 = vmul.f32 %v333, 1.442695
    %v337 = vpow.pop %v336
    %v338 = vsel %vm203, %v335, 0.0
    %339 = vadd.xlane.f32.xlu0 %v338
    %v340 = vpop.xlane.xlu0 %339
    %v341 = vsel %vm203, %v337, 0.0
    %342 = vadd.xlane.f32.xlu0 %v341
    %v343 = vpop.xlane.xlu0 %342
    %v344 = vrcp.pop %v340
    %v345 = vmul.f32 %v340, %v344
    %v346 = vsub.f32 1.0, %v345
    %v347 = vmul.f32 %v344, %v346
    %v348 = vadd.f32 %v344, %v347
    %vm349 = vweird.f32 %v340
    %vm350 = vweird.f32 %v344
    %vm351 = vmor %vm349, %vm350
    %v352 = vsel %vm351, %v344, %v348
    %v353 = vand.u32 2147483647, %v340
    %vm354 = vcmp.eq.f32.partialorder %v353, 8.507059e+37
    %v355 = vand.u32 %v340, 2147483648
    %v356 = vor.u32 1.1754944e-38, %v355
    %v357 = vsel %vm354, %v356, %v352
    %v358 = vrcp.pop %v343
    %v359 = vmul.f32 %v343, %v358
    %v360 = vsub.f32 1.0, %v359
    %v361 = vmul.f32 %v358, %v360
    %v362 = vadd.f32 %v358, %v361
    %vm363 = vweird.f32 %v343
    %vm364 = vweird.f32 %v358
    %vm365 = vmor %vm363, %vm364
    %v366 = vsel %vm365, %v358, %v362
    %v367 = vand.u32 2147483647, %v343
    %vm368 = vcmp.eq.f32.partialorder %v367, 8.507059e+37
    %v369 = vand.u32 %v343, 2147483648
    %v370 = vor.u32 1.1754944e-38, %v369
    %v371 = vsel %vm368, %v370, %v366
    %v372 = vmul.f32 %v335, %v357
    %v373 = vmul.f32 %v337, %v371
    %374 = vrot.lane.b32.xlu0 %v148, 56
    %v375 = vpop.permute.xlu0 %374
    %376 = vrot.lane.b32.xlu0 %v151, 56
    %v377 = vpop.permute.xlu0 %376
    %v381 = vsel %vm203, %v372, 0
    %v384 = vsel %vm203, %v373, 0
    %386 = vmatpush.msra.mxu0 0.0
    %387 = vmatpush.msra.mxu0 0.0
    %388 = vmatpush.msra.mxu0 0.0
    %389 = vmatpush.msra.mxu0 0.0
    %390 = vmatpush.msra.mxu0 0.0
    %391 = vmatpush.msra.mxu0 0.0
    %392 = vmatpush.msra.mxu0 0.0
    %393 = vmatpush.msra.mxu0 0.0
    %394 = vmatpush.msra.mxu0 0.0
    %395 = vmatpush.msra.mxu0 0.0
    %396 = vmatpush.msra.mxu0 0.0
    %397 = vmatpush.msra.mxu0 0.0
    %398 = vmatpush.msra.mxu0 0.0
    %399 = vmatpush.msra.mxu0 0.0
    %400 = vmatpush.msra.mxu0 %v377
    %401 = vmatpush.msra.mxu0 %v375
    %402 = vmatmul.f32.gmra.mxu0 %v381
    %v403 = vpop.f32.mrf.mxu0
    %v404 = vadd.f32 0.0, %v403
    %405 = vmatmul.f32.gmra.mxu0 %v384
    %v406 = vpop.f32.mrf.mxu0
    %v407 = vadd.f32 0.0, %v406
    %408 = vdwg.mxu0
    %v410 = vsel %vm171, %v404, 0
    %v413 = vsel %vm171, %v407, 0
    %415 = vmatpush.msra.mxu0 0.0
    %416 = vmatpush.msra.mxu0 0.0
    %417 = vmatpush.msra.mxu0 0.0
    %418 = vmatpush.msra.mxu0 0.0
    %419 = vmatpush.msra.mxu0 0.0
    %420 = vmatpush.msra.mxu0 0.0
    %421 = vmatpush.msra.mxu0 0.0
    %422 = vmatpush.msra.mxu0 0.0
    %423 = vmatpush.msra.mxu0 0.0
    %424 = vmatpush.msra.mxu0 0.0
    %425 = vmatpush.msra.mxu0 0.0
    %426 = vmatpush.msra.mxu0 0.0
    %427 = vmatpush.msra.mxu0 0.0
    %428 = vmatpush.msra.mxu0 0.0
    %429 = vmatpush.msra.mxu0 0.0
    %430 = vmatpush.msra.mxu0 %v54
    %431 = vmatmul.f32.gmra.mxu0 %v410
    %v432 = vpop.f32.mrf.mxu0
    %v433 = vadd.f32 0.0, %v432
    %434 = vmatmul.f32.gmra.mxu0 %v413
    %v435 = vpop.f32.mrf.mxu0
    %v436 = vadd.f32 0.0, %v435
    %437 = vdwg.mxu0
    %v439 = vsel %vm171, %v282, 0
    %v442 = vsel %vm171, %v285, 0
    %444 = vmatpush.msra.mxu0 0.0
    %445 = vmatpush.msra.mxu0 0.0
    %446 = vmatpush.msra.mxu0 0.0
    %447 = vmatpush.msra.mxu0 0.0
    %448 = vmatpush.msra.mxu0 0.0
    %449 = vmatpush.msra.mxu0 0.0
    %450 = vmatpush.msra.mxu0 0.0
    %451 = vmatpush.msra.mxu0 0.0
    %452 = vmatpush.msra.mxu0 0.0
    %453 = vmatpush.msra.mxu0 0.0
    %454 = vmatpush.msra.mxu0 0.0
    %455 = vmatpush.msra.mxu0 0.0
    %456 = vmatpush.msra.mxu0 0.0
    %457 = vmatpush.msra.mxu0 0.0
    %458 = vmatpush.msra.mxu0 0.0
    %459 = vmatpush.msra.mxu0 %v51
    %460 = vmatmul.f32.gmra.mxu0 %v439
    %v461 = vpop.f32.mrf.mxu0
    %v462 = vadd.f32 %v433, %v461
    %463 = vmatmul.f32.gmra.mxu0 %v442
    %v464 = vpop.f32.mrf.mxu0
    %v465 = vadd.f32 %v436, %v464
    %466 = vdwg.mxu0
    %467 = vrot.lane.b32.xlu0 %v148, 112
    %v468 = vpop.permute.xlu0 %467
    %469 = vrot.lane.b32.xlu0 %v151, 112
    %v470 = vpop.permute.xlu0 %469
    %471 = vrot.lane.b32.xlu0 %v148, 80
    %v472 = vpop.permute.xlu0 %471
    %473 = vrot.lane.b32.xlu0 %v151, 80
    %v474 = vpop.permute.xlu0 %473
    %v475 = vsel %vm171, %v468, 0
    %v477 = vsel %vm171, %v470, 0
    %v479 = vsel %vm171, %v472, 0
    %v481 = vsel %vm171, %v474, 0
    %483 = vmatpush.xpose.msra.mxu0 0.0
    %484 = vmatpush.xpose.msra.mxu0 0.0
    %485 = vmatpush.xpose.msra.mxu0 0.0
    %486 = vmatpush.xpose.msra.mxu0 0.0
    %487 = vmatpush.xpose.msra.mxu0 0.0
    %488 = vmatpush.xpose.msra.mxu0 0.0
    %489 = vmatpush.xpose.msra.mxu0 0.0
    %490 = vmatpush.xpose.msra.mxu0 0.0
    %491 = vmatpush.xpose.msra.mxu0 0.0
    %492 = vmatpush.xpose.msra.mxu0 0.0
    %493 = vmatpush.xpose.msra.mxu0 0.0
    %494 = vmatpush.xpose.msra.mxu0 0.0
    %495 = vmatpush.xpose.msra.mxu0 0.0
    %496 = vmatpush.xpose.msra.mxu0 0.0
    %497 = vmatpush.xpose.msra.mxu0 %v481
    %498 = vmatpush.xpose.msra.mxu0 %v479
    %499 = vmatmul.f32.gmra.mxu0 %v475
    %v500 = vpop.f32.mrf.mxu0
    %v501 = vadd.f32 %v163, %v500
    %502 = vmatmul.f32.gmra.mxu0 %v477
    %v503 = vpop.f32.mrf.mxu0
    %v504 = vadd.f32 %v164, %v503
    %505 = vdwg.mxu0
    %v506 = vsel %vm203, %v501, -inf
    %507 = vmax.xlane.f32.xlu0 %v506
    %v508 = vpop.xlane.xlu0 %507
    %v509 = vsel %vm203, %v504, -inf
    %510 = vmax.xlane.f32.xlu0 %v509
    %v511 = vpop.xlane.xlu0 %510
    %v512 = vsub.f32 %v501, %v508
    %v513 = vsub.f32 %v504, %v511
    %v514 = vmul.f32 %v512, 1.442695
    %v515 = vpow.pop %v514
    %v516 = vmul.f32 %v513, 1.442695
    %v517 = vpow.pop %v516
    %v518 = vsel %vm203, %v515, 0.0
    %519 = vadd.xlane.f32.xlu0 %v518
    %v520 = vpop.xlane.xlu0 %519
    %v521 = vsel %vm203, %v517, 0.0
    %522 = vadd.xlane.f32.xlu0 %v521
    %v523 = vpop.xlane.xlu0 %522
    %v524 = vrcp.pop %v520
    %v525 = vmul.f32 %v520, %v524
    %v526 = vsub.f32 1.0, %v525
    %v527 = vmul.f32 %v524, %v526
    %v528 = vadd.f32 %v524, %v527
    %vm529 = vweird.f32 %v520
    %vm530 = vweird.f32 %v524
    %vm531 = vmor %vm529, %vm530
    %v532 = vsel %vm531, %v524, %v528
    %v533 = vand.u32 2147483647, %v520
    %vm534 = vcmp.eq.f32.partialorder %v533, 8.507059e+37
    %v535 = vand.u32 %v520, 2147483648
    %v536 = vor.u32 1.1754944e-38, %v535
    %v537 = vsel %vm534, %v536, %v532
    %v538 = vrcp.pop %v523
    %v539 = vmul.f32 %v523, %v538
    %v540 = vsub.f32 1.0, %v539
    %v541 = vmul.f32 %v538, %v540
    %v542 = vadd.f32 %v538, %v541
    %vm543 = vweird.f32 %v523
    %vm544 = vweird.f32 %v538
    %vm545 = vmor %vm543, %vm544
    %v546 = vsel %vm545, %v538, %v542
    %v547 = vand.u32 2147483647, %v523
    %vm548 = vcmp.eq.f32.partialorder %v547, 8.507059e+37
    %v549 = vand.u32 %v523, 2147483648
    %v550 = vor.u32 1.1754944e-38, %v549
    %v551 = vsel %vm548, %v550, %v546
    %v552 = vmul.f32 %v515, %v537
    %v553 = vmul.f32 %v517, %v551
    %554 = vrot.lane.b32.xlu0 %v148, 48
    %v555 = vpop.permute.xlu0 %554
    %556 = vrot.lane.b32.xlu0 %v151, 48
    %v557 = vpop.permute.xlu0 %556
    %v561 = vsel %vm203, %v552, 0
    %v564 = vsel %vm203, %v553, 0
    %566 = vmatpush.msra.mxu0 0.0
    %567 = vmatpush.msra.mxu0 0.0
    %568 = vmatpush.msra.mxu0 0.0
    %569 = vmatpush.msra.mxu0 0.0
    %570 = vmatpush.msra.mxu0 0.0
    %571 = vmatpush.msra.mxu0 0.0
    %572 = vmatpush.msra.mxu0 0.0
    %573 = vmatpush.msra.mxu0 0.0
    %574 = vmatpush.msra.mxu0 0.0
    %575 = vmatpush.msra.mxu0 0.0
    %576 = vmatpush.msra.mxu0 0.0
    %577 = vmatpush.msra.mxu0 0.0
    %578 = vmatpush.msra.mxu0 0.0
    %579 = vmatpush.msra.mxu0 0.0
    %580 = vmatpush.msra.mxu0 %v557
    %581 = vmatpush.msra.mxu0 %v555
    %582 = vmatmul.f32.gmra.mxu0 %v561
    %v583 = vpop.f32.mrf.mxu0
    %v584 = vadd.f32 0.0, %v583
    %585 = vmatmul.f32.gmra.mxu0 %v564
    %v586 = vpop.f32.mrf.mxu0
    %v587 = vadd.f32 0.0, %v586
    %588 = vdwg.mxu0
    %v590 = vsel %vm171, %v584, 0
    %v593 = vsel %vm171, %v587, 0
    %595 = vmatpush.msra.mxu0 0.0
    %596 = vmatpush.msra.mxu0 0.0
    %597 = vmatpush.msra.mxu0 0.0
    %598 = vmatpush.msra.mxu0 0.0
    %599 = vmatpush.msra.mxu0 0.0
    %600 = vmatpush.msra.mxu0 0.0
    %601 = vmatpush.msra.mxu0 0.0
    %602 = vmatpush.msra.mxu0 0.0
    %603 = vmatpush.msra.mxu0 0.0
    %604 = vmatpush.msra.mxu0 0.0
    %605 = vmatpush.msra.mxu0 0.0
    %606 = vmatpush.msra.mxu0 0.0
    %607 = vmatpush.msra.mxu0 0.0
    %608 = vmatpush.msra.mxu0 0.0
    %609 = vmatpush.msra.mxu0 0.0
    %610 = vmatpush.msra.mxu0 %v57
    %611 = vmatmul.f32.gmra.mxu0 %v590
    %v612 = vpop.f32.mrf.mxu0
    %v613 = vadd.f32 0.0, %v612
    %614 = vmatmul.f32.gmra.mxu0 %v593
    %v615 = vpop.f32.mrf.mxu0
    %v616 = vadd.f32 0.0, %v615
    %617 = vdwg.mxu0
    %v618 = vadd.f32 %v462, %v613
    %v619 = vadd.f32 %v465, %v616
    %620 = vrot.lane.b32.xlu0 %v148, 104
    %v621 = vpop.permute.xlu0 %620
    %622 = vrot.lane.b32.xlu0 %v151, 104
    %v623 = vpop.permute.xlu0 %622
    %624 = vrot.lane.b32.xlu0 %v148, 72
    %v625 = vpop.permute.xlu0 %624
    %626 = vrot.lane.b32.xlu0 %v151, 72
    %v627 = vpop.permute.xlu0 %626
    %v628 = vsel %vm171, %v621, 0
    %v630 = vsel %vm171, %v623, 0
    %v632 = vsel %vm171, %v625, 0
    %v634 = vsel %vm171, %v627, 0
    %636 = vmatpush.xpose.msra.mxu0 0.0
    %637 = vmatpush.xpose.msra.mxu0 0.0
    %638 = vmatpush.xpose.msra.mxu0 0.0
    %639 = vmatpush.xpose.msra.mxu0 0.0
    %640 = vmatpush.xpose.msra.mxu0 0.0
    %641 = vmatpush.xpose.msra.mxu0 0.0
    %642 = vmatpush.xpose.msra.mxu0 0.0
    %643 = vmatpush.xpose.msra.mxu0 0.0
    %644 = vmatpush.xpose.msra.mxu0 0.0
    %645 = vmatpush.xpose.msra.mxu0 0.0
    %646 = vmatpush.xpose.msra.mxu0 0.0
    %647 = vmatpush.xpose.msra.mxu0 0.0
    %648 = vmatpush.xpose.msra.mxu0 0.0
    %649 = vmatpush.xpose.msra.mxu0 0.0
    %650 = vmatpush.xpose.msra.mxu0 %v634
    %651 = vmatpush.xpose.msra.mxu0 %v632
    %652 = vmatmul.f32.gmra.mxu0 %v628
    %v653 = vpop.f32.mrf.mxu0
    %v654 = vadd.f32 %v163, %v653
    %655 = vmatmul.f32.gmra.mxu0 %v630
    %v656 = vpop.f32.mrf.mxu0
    %v657 = vadd.f32 %v164, %v656
    %658 = vdwg.mxu0
    %v659 = vsel %vm203, %v654, -inf
    %660 = vmax.xlane.f32.xlu0 %v659
    %v661 = vpop.xlane.xlu0 %660
    %v662 = vsel %vm203, %v657, -inf
    %663 = vmax.xlane.f32.xlu0 %v662
    %v664 = vpop.xlane.xlu0 %663
    %v665 = vsub.f32 %v654, %v661
    %v666 = vsub.f32 %v657, %v664
    %v667 = vmul.f32 %v665, 1.442695
    %v668 = vpow.pop %v667
    %v669 = vmul.f32 %v666, 1.442695
    %v670 = vpow.pop %v669
    %v671 = vsel %vm203, %v668, 0.0
    %672 = vadd.xlane.f32.xlu0 %v671
    %v673 = vpop.xlane.xlu0 %672
    %v674 = vsel %vm203, %v670, 0.0
    %675 = vadd.xlane.f32.xlu0 %v674
    %v676 = vpop.xlane.xlu0 %675
    %v677 = vrcp.pop %v673
    %v678 = vmul.f32 %v673, %v677
    %v679 = vsub.f32 1.0, %v678
    %v680 = vmul.f32 %v677, %v679
    %v681 = vadd.f32 %v677, %v680
    %vm682 = vweird.f32 %v673
    %vm683 = vweird.f32 %v677
    %vm684 = vmor %vm682, %vm683
    %v685 = vsel %vm684, %v677, %v681
    %v686 = vand.u32 2147483647, %v673
    %vm687 = vcmp.eq.f32.partialorder %v686, 8.507059e+37
    %v688 = vand.u32 %v673, 2147483648
    %v689 = vor.u32 1.1754944e-38, %v688
    %v690 = vsel %vm687, %v689, %v685
    %v691 = vrcp.pop %v676
    %v692 = vmul.f32 %v676, %v691
    %v693 = vsub.f32 1.0, %v692
    %v694 = vmul.f32 %v691, %v693
    %v695 = vadd.f32 %v691, %v694
    %vm696 = vweird.f32 %v676
    %vm697 = vweird.f32 %v691
    %vm698 = vmor %vm696, %vm697
    %v699 = vsel %vm698, %v691, %v695
    %v700 = vand.u32 2147483647, %v676
    %vm701 = vcmp.eq.f32.partialorder %v700, 8.507059e+37
    %v702 = vand.u32 %v676, 2147483648
    %v703 = vor.u32 1.1754944e-38, %v702
    %v704 = vsel %vm701, %v703, %v699
    %v705 = vmul.f32 %v668, %v690
    %v706 = vmul.f32 %v670, %v704
    %707 = vrot.lane.b32.xlu0 %v148, 40
    %v708 = vpop.permute.xlu0 %707
    %709 = vrot.lane.b32.xlu0 %v151, 40
    %v710 = vpop.permute.xlu0 %709
    %v714 = vsel %vm203, %v705, 0
    %v717 = vsel %vm203, %v706, 0
    %719 = vmatpush.msra.mxu0 0.0
    %720 = vmatpush.msra.mxu0 0.0
    %721 = vmatpush.msra.mxu0 0.0
    %722 = vmatpush.msra.mxu0 0.0
    %723 = vmatpush.msra.mxu0 0.0
    %724 = vmatpush.msra.mxu0 0.0
    %725 = vmatpush.msra.mxu0 0.0
    %726 = vmatpush.msra.mxu0 0.0
    %727 = vmatpush.msra.mxu0 0.0
    %728 = vmatpush.msra.mxu0 0.0
    %729 = vmatpush.msra.mxu0 0.0
    %730 = vmatpush.msra.mxu0 0.0
    %731 = vmatpush.msra.mxu0 0.0
    %732 = vmatpush.msra.mxu0 0.0
    %733 = vmatpush.msra.mxu0 %v710
    %734 = vmatpush.msra.mxu0 %v708
    %735 = vmatmul.f32.gmra.mxu0 %v714
    %v736 = vpop.f32.mrf.mxu0
    %v737 = vadd.f32 0.0, %v736
    %738 = vmatmul.f32.gmra.mxu0 %v717
    %v739 = vpop.f32.mrf.mxu0
    %v740 = vadd.f32 0.0, %v739
    %741 = vdwg.mxu0
    %v743 = vsel %vm171, %v737, 0
    %v746 = vsel %vm171, %v740, 0
    %748 = vmatpush.msra.mxu0 0.0
    %749 = vmatpush.msra.mxu0 0.0
    %750 = vmatpush.msra.mxu0 0.0
    %751 = vmatpush.msra.mxu0 0.0
    %752 = vmatpush.msra.mxu0 0.0
    %753 = vmatpush.msra.mxu0 0.0
    %754 = vmatpush.msra.mxu0 0.0
    %755 = vmatpush.msra.mxu0 0.0
    %756 = vmatpush.msra.mxu0 0.0
    %757 = vmatpush.msra.mxu0 0.0
    %758 = vmatpush.msra.mxu0 0.0
    %759 = vmatpush.msra.mxu0 0.0
    %760 = vmatpush.msra.mxu0 0.0
    %761 = vmatpush.msra.mxu0 0.0
    %762 = vmatpush.msra.mxu0 0.0
    %763 = vmatpush.msra.mxu0 %v60
    %764 = vmatmul.f32.gmra.mxu0 %v743
    %v765 = vpop.f32.mrf.mxu0
    %v766 = vadd.f32 0.0, %v765
    %767 = vmatmul.f32.gmra.mxu0 %v746
    %v768 = vpop.f32.mrf.mxu0
    %v769 = vadd.f32 0.0, %v768
    %770 = vdwg.mxu0
    %v771 = vadd.f32 %v618, %v766
    %v772 = vadd.f32 %v619, %v769
    %v773 = vperm.slane %v70, 1
    %v774 = vadd.f32 %v771, %v773
    %v775 = vadd.f32 %v772, %v773
    %v776 = vadd.f32 %v774, %v48
    %v777 = vadd.f32 %v775, %v49
    %v778 = vsel %vm71, %v776, 0.0
    %779 = vadd.xlane.f32.xlu0 %v778
    %v780 = vpop.xlane.xlu0 %779
    %v781 = vsel %vm71, %v777, 0.0
    %782 = vadd.xlane.f32.xlu0 %v781
    %v783 = vpop.xlane.xlu0 %782
    %v784 = vmul.f32 %v780, %v84
    %v785 = vmul.f32 %v783, %v84
    %v786 = vsub.f32 %v776, %v784
    %v787 = vsub.f32 %v777, %v785
    %v788 = vmul.f32 %v786, %v786
    %v789 = vmul.f32 %v787, %v787
    %v790 = vsel %vm71, %v788, 0.0
    %791 = vadd.xlane.f32.xlu0 %v790
    %v792 = vpop.xlane.xlu0 %791
    %v793 = vsel %vm71, %v789, 0.0
    %794 = vadd.xlane.f32.xlu0 %v793
    %v795 = vpop.xlane.xlu0 %794
    %v796 = vmul.f32 %v792, %v84
    %v797 = vmul.f32 %v795, %v84
    %v798 = vadd.f32 %v796, 1e-05
    %v799 = vadd.f32 %v797, 1e-05
    %v800 = vrsqrt.pop %v798
    %v801 = vmul.f32 %v800, %v798
    %v802 = vmul.f32 %v801, %v800
    %v803 = vmul.f32 0.5, %v802
    %v804 = vsub.f32 1.5, %v803
    %v805 = vmul.f32 %v800, %v804
    %vm806 = vweird.f32 %v798
    %vm807 = vweird.f32 %v800
    %vm808 = vmor %vm806, %vm807
    %v809 = vsel %vm808, %v800, %v805
    %v810 = vrsqrt.pop %v799
    %v811 = vmul.f32 %v810, %v799
    %v812 = vmul.f32 %v811, %v810
    %v813 = vmul.f32 0.5, %v812
    %v814 = vsub.f32 1.5, %v813
    %v815 = vmul.f32 %v810, %v814
    %vm816 = vweird.f32 %v799
    %vm817 = vweird.f32 %v810
    %vm818 = vmor %vm816, %vm817
    %v819 = vsel %vm818, %v810, %v815
    %v820 = vmul.f32 %v786, %v809
    %v821 = vmul.f32 %v787, %v819
    %v822 = vperm.slane %v70, 2
    %v824 = vsel %vm71, %v820, 0
    %v827 = vsel %vm71, %v821, 0
    %829 = vmatpush.msra.mxu0 0.0
    %830 = vmatpush.msra.mxu0 0.0
    %831 = vmatpush.msra.mxu0 0.0
    %832 = vmatpush.msra.mxu0 0.0
    %833 = vmatpush.msra.mxu0 0.0
    %834 = vmatpush.msra.mxu0 0.0
    %835 = vmatpush.msra.mxu0 0.0
    %836 = vmatpush.msra.mxu0 0.0
    %837 = vmatpush.msra.mxu0 0.0
    %838 = vmatpush.msra.mxu0 0.0
    %839 = vmatpush.msra.mxu0 0.0
    %840 = vmatpush.msra.mxu0 0.0
    %841 = vmatpush.msra.mxu0 %v61
    %842 = vmatpush.msra.mxu0 %v58
    %843 = vmatpush.msra.mxu0 %v55
    %844 = vmatpush.msra.mxu0 %v52
    %845 = vmatmul.f32.gmra.mxu0 %v824
    %v846 = vpop.f32.mrf.mxu0
    %v847 = vadd.f32 %v822, %v846
    %848 = vmatmul.f32.gmra.mxu0 %v827
    %v849 = vpop.f32.mrf.mxu0
    %v850 = vadd.f32 %v822, %v849
    %851 = vdwg.mxu0
    %v852 = vmax.f32 %v847, 0.0
    %v853 = vmax.f32 %v850, 0.0
    %v854 = vperm.slane %v70, 3
    %vm855 = vcmask 523264
    %v857 = vsel %vm855, %v852, 0
    %v860 = vsel %vm855, %v853, 0
    %862 = vmatpush.msra.mxu0 0.0
    %863 = vmatpush.msra.mxu0 0.0
    %864 = vmatpush.msra.mxu0 0.0
    %865 = vmatpush.msra.mxu0 0.0
    %866 = vmatpush.msra.mxu0 0.0
    %867 = vmatpush.msra.mxu0 0.0
    %868 = vmatpush.msra.mxu0 0.0
    %869 = vmatpush.msra.mxu0 0.0
    %870 = vmatpush.msra.mxu0 %v69
    %871 = vmatpush.msra.mxu0 %v68
    %872 = vmatpush.msra.mxu0 %v67
    %873 = vmatpush.msra.mxu0 %v66
    %874 = vmatpush.msra.mxu0 %v65
    %875 = vmatpush.msra.mxu0 %v64
    %876 = vmatpush.msra.mxu0 %v63
    %877 = vmatpush.msra.mxu0 %v62
    %878 = vmatmul.f32.gmra.mxu0 %v857
    %v879 = vpop.f32.mrf.mxu0
    %v880 = vadd.f32 %v854, %v879
    %881 = vmatmul.f32.gmra.mxu0 %v860
    %v882 = vpop.f32.mrf.mxu0
    %v883 = vadd.f32 %v854, %v882
    %884 = vdwg.mxu0
    %v885 = vadd.f32 %v880, %v776
    %v886 = vadd.f32 %v883, %v777
    %887 = vst.msk [vmem:[#allocation7] sm:$0xff] %vm71, %v885
    %888 = vst.msk [vmem:[#allocation7 + $0x8] sm:$0xff] %vm71, %v886
    // Predicated region
    $region26: #{encoder_block.1} parent=1 // pred_check
      _
    $region27: #{encoder_block.1} parent=1 // pred_check_branch
      %890 = sbr.rel (0) target = $region29
    $region28: #{encoder_block.1} parent=1 // pred_region
      %892 = vsyncadd [#allocation4], 0
      %s893 = sshll.u32 [#allocation7], 4
      %s894 = int_to_ptr.vmem [resolvable:$true] %s893
      %s895 = sshll.u32 %s4, 4
      %s896 = int_to_ptr.hbm [resolvable:$true] %s895
      %901 = dma.vmem_to_hbm [thread:$0]  %s894, 256, %s896, [#allocation4], 128, 128, 8
    $region29: #{encoder_block.1} parent=1 // pred_fallthru
      _
    // Predicated region
    $region30: #{encoder_block.1} parent=1 // pred_check
      _
    $region31: #{encoder_block.1} parent=1 // pred_check_branch
      %903 = sbr.rel (0) target = $region33
    $region32: #{encoder_block.1} parent=1 // pred_region
      %905 = dma.done [#allocation4], 256
    $region33: #{encoder_block.1} parent=1 // pred_fallthru
      _
    %906 = vsyncpa [#allocation3], 1
    %907 = vsyncpa [#allocation6], 1
    %908 = vsyncpa [#allocation4], 1

</llo_original>
